<compile_context>
chip_gen: v7x
topology: tpu7x:2x2x1
jax: 0.10.0
libtpu: 0.0.40
codegen_flags: <defaults>
</compile_context>

<pallas_src>
import jax
import jax.numpy as jnp
from jax.experimental import pallas as pl
from jax.experimental.pallas import tpu as pltpu


_TR_MAX = 256            # row (sublane) tile
_TL_MAX = 4096           # lane tile -> 4 MiB f32 tiles with _TR_MAX rows
_VMEM_LIMIT = 48 << 20   # < v7x 64 MiB physical; plenty of HBM-stream buffering
_RESIDENT_ROW_CAP = 4096 # keep scale/bias fully grid-resident up to this many rows


def _pick_lane_tile(L):
    """Largest 128-aligned lane tile <= _TL_MAX, preferring one that divides L."""
    if L <= _TL_MAX:
        return L                       # full lane extent (always legal)
    t = _TL_MAX
    while t >= 1024:                   # prefer an even division, but not tiny tiles
        if L % t == 0:
            return t
        t -= 128
    return _TL_MAX                     # ragged tail tolerated (tile still 128-aligned)


def _make_rows_kernel(tr, grid_rows, resident):
    def kernel(x_ref, scale_ref, bias_ref, o_ref):
        if resident and grid_rows > 1:
            # scale/bias are the full (R_pad, 1) columns; slice our row stripe.
            r0 = pl.multiple_of(pl.program_id(0) * tr, tr)
            s = scale_ref[pl.ds(r0, tr), :]
            b = bias_ref[pl.ds(r0, tr), :]
        else:
            s = scale_ref[...]
            b = bias_ref[...]
        # f32 FMA regardless of input dtype (HBM-bound kernel: the casts are free).
        o_ref[...] = (x_ref[...].astype(jnp.float32) * s + b).astype(o_ref.dtype)
    return kernel


def _lanes_kernel(x_ref, scale_ref, bias_ref, o_ref):
    # scale/bias: (1, C*H*W) broadcast over the row (sublane) dimension.
    o_ref[...] = (x_ref[...].astype(jnp.float32) * scale_ref[...]
                  + bias_ref[...]).astype(o_ref.dtype)


def _normalize_rows(x_nchw, scale_c, bias_c, out_dtype, donate_input):
    """Main path (H*W >= 128): slab = (N*C, H*W), per-row scale/bias columns."""
    N, C, H, W = x_nchw.shape
    R, L = N * C, H * W
    x2d = x_nchw.reshape(R, L)

    TR = R if R <= _TR_MAX else _TR_MAX
    TL = _pick_lane_tile(L)
    grid_rows = pl.cdiv(R, TR)
    grid_lanes = pl.cdiv(L, TL)
    R_pad = grid_rows * TR

    scale_rows = jnp.tile(scale_c, N).reshape(R, 1)
    bias_rows = jnp.tile(bias_c, N).reshape(R, 1)
    if R_pad != R:
        pad = ((0, R_pad - R), (0, 0))
        scale_rows = jnp.pad(scale_rows, pad)
        bias_rows = jnp.pad(bias_rows, pad)

    resident = R_pad <= _RESIDENT_ROW_CAP
    if resident:
        # Single DMA for the whole kernel; no re-fetch, no double-buffer pair.
        sb_spec = pl.BlockSpec((R_pad, 1), lambda i, j: (0, 0))
    else:
        # Huge row counts: stream a (TR,1) column per row stripe instead.
        sb_spec = pl.BlockSpec((TR, 1), lambda i, j: (i, 0))

    kernel = _make_rows_kernel(TR, grid_rows, resident)
    alias = {0: 0} if (donate_input and out_dtype == x2d.dtype) else {}

    out2d = pl.pallas_call(
        kernel,
        out_shape=jax.ShapeDtypeStruct((R, L), out_dtype),
        grid_spec=pltpu.PrefetchScalarGridSpec(
            num_scalar_prefetch=0,
            grid=(grid_rows, grid_lanes),
            in_specs=[
                pl.BlockSpec((TR, TL), lambda i, j: (i, j)),
                sb_spec,
                sb_spec,
            ],
            out_specs=pl.BlockSpec((TR, TL), lambda i, j: (i, j)),
        ),
        compiler_params=pltpu.CompilerParams(
            # Pure elementwise, no accumulator: both axes independent so v7x's
            # two TensorCores stay fed even for small-R shapes. No-op on v5e/v6e.
            dimension_semantics=("parallel", "parallel"),
            vmem_limit_bytes=_VMEM_LIMIT,
        ),
        input_output_aliases=alias,
    )(x2d, scale_rows, bias_rows)

    return out2d.reshape(N, C, H, W)


def _normalize_lanes(x_nchw, scale_c, bias_c, out_dtype, donate_input):
    """Fallback (H*W < 128): slab = (N, C*H*W) keeps the lane dim as wide as possible."""
    N, C, H, W = x_nchw.shape
    L = H * W
    CL = C * L
    x2d = x_nchw.reshape(N, CL)

    scale_lane = jnp.repeat(scale_c, L).reshape(1, CL)
    bias_lane = jnp.repeat(bias_c, L).reshape(1, CL)

    # Keep each tile <= ~4 MiB f32.
    cap = min(_TR_MAX, max(8, ((4 << 20) // (CL * 4)) // 8 * 8))
    TRN = N if N <= cap else cap
    grid_rows = pl.cdiv(N, TRN)

    alias = {0: 0} if (donate_input and out_dtype == x2d.dtype) else {}

    out2d = pl.pallas_call(
        _lanes_kernel,
        out_shape=jax.ShapeDtypeStruct((N, CL), out_dtype),
        grid_spec=pltpu.PrefetchScalarGridSpec(
            num_scalar_prefetch=0,
            grid=(grid_rows,),
            in_specs=[
                pl.BlockSpec((TRN, CL), lambda i: (i, 0)),
                pl.BlockSpec((1, CL), lambda i: (0, 0)),   # grid-resident
                pl.BlockSpec((1, CL), lambda i: (0, 0)),   # grid-resident
            ],
            out_specs=pl.BlockSpec((TRN, CL), lambda i: (i, 0)),
        ),
        compiler_params=pltpu.CompilerParams(
            dimension_semantics=("parallel",),
            vmem_limit_bytes=_VMEM_LIMIT,
        ),
        input_output_aliases=alias,
    )(x2d, scale_lane, bias_lane)

    return out2d.reshape(N, C, H, W)


def normalize(x_nchw, mean, std, *, donate_input=False):
    """Per-channel normalize of an NCHW tensor via a tiled Pallas TPU kernel."""
    N, C, H, W = x_nchw.shape
    in_dtype = x_nchw.dtype
    # Integer inputs (e.g. uint8 images) get a float32 output; float inputs keep dtype.
    out_dtype = in_dtype if jnp.issubdtype(in_dtype, jnp.floating) else jnp.float32

    mean_f = jnp.asarray(mean, jnp.float32).reshape(-1)
    std_f = jnp.asarray(std, jnp.float32).reshape(-1)
    # Hoist the divide: (x - mean)/std == x*(1/std) + (-mean/std); keep coefficients f32.
    scale_c = 1.0 / std_f
    bias_c = -mean_f / std_f

    if H * W >= 128:
        return _normalize_rows(x_nchw, scale_c, bias_c, out_dtype, donate_input)
    # Sub-128 lane width would hit the masked-store cliff; use the lane-dense fallback.
    return _normalize_lanes(x_nchw, scale_c, bias_c, out_dtype, donate_input)


if __name__ == "__main__":
    key = jax.random.PRNGKey(0)

    # --- Test 1: main path, f32, small NCHW image batch -----------------------
    N, C, H, W = 2, 4, 16, 16
    k1, k2, k3 = jax.random.split(key, 3)
    x = jax.random.normal(k1, (N, C, H, W), dtype=jnp.float32)
    mean = jnp.array([0.485, 0.456, 0.406, 0.5], dtype=jnp.float32)
    std = jnp.array([0.229, 0.224, 0.225, 0.25], dtype=jnp.float32)

    out = jax.block_until_ready(normalize(x, mean, std))
    ref = (x - mean[None, :, None, None]) / std[None, :, None, None]
    assert out.shape == x.shape and out.dtype == x.dtype
    assert jnp.allclose(out, ref, atol=1e-5, rtol=1e-5)

    # --- Test 2: small-spatial fallback (H*W < 128) ----------------------------
    N2, C2, H2, W2 = 2, 3, 7, 7
    x2 = jax.random.normal(k2, (N2, C2, H2, W2), dtype=jnp.float32)
    mean2 = jnp.array([0.485, 0.456, 0.406], dtype=jnp.float32)
    std2 = jnp.array([0.229, 0.224, 0.225], dtype=jnp.float32)
    out2 = jax.block_until_ready(normalize(x2, mean2, std2))
    ref2 = (x2 - mean2[None, :, None, None]) / std2[None, :, None, None]
    assert jnp.allclose(out2, ref2, atol=1e-5, rtol=1e-5)

    # --- Test 3: many rows (R > 256) exercises the resident-column row slicing --
    N3, C3, H3, W3 = 2, 130, 16, 16
    x3 = jax.random.normal(k3, (N3, C3, H3, W3), dtype=jnp.float32)
    mean3 = jnp.linspace(0.0, 1.0, C3, dtype=jnp.float32)
    std3 = jnp.linspace(0.5, 1.5, C3, dtype=jnp.float32)
    out3 = jax.block_until_ready(normalize(x3, mean3, std3))
    ref3 = (x3 - mean3[None, :, None, None]) / std3[None, :, None, None]
    assert jnp.allclose(out3, ref3, atol=1e-5, rtol=1e-5)

    # --- Test 4: bf16 input, f32 in-kernel compute ------------------------------
    xb = x.astype(jnp.bfloat16)
    outb = jax.block_until_ready(normalize(xb, mean, std))
    refb = (xb.astype(jnp.float32) - mean[None, :, None, None]) / std[None, :, None, None]
    assert outb.dtype == jnp.bfloat16
    assert jnp.allclose(outb.astype(jnp.float32), refb, atol=1e-2, rtol=1e-2)

    print("KERNEL_OK")
</pallas_src>

<mosaic_0001>
module attributes {stable_mosaic.version = 11 : i64} {
  func.func @kernel(%arg0: i32, %arg1: i32, %arg2: memref<8x256xf32, #tpu.memory_space<vmem>>, %arg3: memref<8x1xf32, #tpu.memory_space<vmem>>, %arg4: memref<8x1xf32, #tpu.memory_space<vmem>>, %arg5: memref<8x256xf32, #tpu.memory_space<vmem>>) attributes {dimension_semantics = [#tpu.dimension_semantics<parallel>, #tpu.dimension_semantics<parallel>], iteration_bounds = array<i64: 1, 1>, scalar_prefetch = 0 : i64, scratch_operands = 0 : i64, tpu.core_type = #tpu.core_type<tc>, window_params = [{transform_indices = @transform_0, window_bounds = array<i64: 8, 256>}, {pipeline_mode = #tpu.pipeline_mode<synchronous>, transform_indices = @transform_1, window_bounds = array<i64: 8, 1>}, {pipeline_mode = #tpu.pipeline_mode<synchronous>, transform_indices = @transform_2, window_bounds = array<i64: 8, 1>}, {transform_indices = @transform_3, window_bounds = array<i64: 8, 256>}]} {
    %c0 = arith.constant 0 : index
    %c0_0 = arith.constant 0 : index
    %0 = vector.load %arg3[%c0, %c0_0] : memref<8x1xf32, #tpu.memory_space<vmem>>, vector<8x1xf32>
    %c0_1 = arith.constant 0 : index
    %c0_2 = arith.constant 0 : index
    %1 = vector.load %arg4[%c0_1, %c0_2] : memref<8x1xf32, #tpu.memory_space<vmem>>, vector<8x1xf32>
    %c0_3 = arith.constant 0 : index
    %c0_4 = arith.constant 0 : index
    %2 = vector.load %arg2[%c0_3, %c0_4] : memref<8x256xf32, #tpu.memory_space<vmem>>, vector<8x256xf32>
    %3 = vector.broadcast %0 : vector<8x1xf32> to vector<8x256xf32>
    %4 = arith.mulf %2, %3 : vector<8x256xf32>
    %5 = vector.broadcast %1 : vector<8x1xf32> to vector<8x256xf32>
    %6 = arith.addf %4, %5 : vector<8x256xf32>
    %c0_5 = arith.constant 0 : index
    %c0_6 = arith.constant 0 : index
    %7 = vector.load %arg5[%c0_5, %c0_6] : memref<8x256xf32, #tpu.memory_space<vmem>>, vector<8x256xf32>
    tpu.vector_store %arg5[%c0_5, %c0_6], %6 {strides = array<i32>} : memref<8x256xf32, #tpu.memory_space<vmem>>, vector<8x256xf32>,
    return
  }
  func.func @transform_0(%arg0: i32, %arg1: i32) -> (i32, i32) {
    %c0_i32 = arith.constant 0 : i32
    return %arg0, %arg1 : i32, i32
  }
  func.func @transform_1(%arg0: i32, %arg1: i32) -> (i32, i32) {
    %c0_i32 = arith.constant 0 : i32
    %c0_i32_0 = arith.constant 0 : i32
    %c0_i32_1 = arith.constant 0 : i32
    return %c0_i32, %c0_i32_0 : i32, i32
  }
  func.func @transform_2(%arg0: i32, %arg1: i32) -> (i32, i32) {
    %c0_i32 = arith.constant 0 : i32
    %c0_i32_0 = arith.constant 0 : i32
    %c0_i32_1 = arith.constant 0 : i32
    return %c0_i32, %c0_i32_0 : i32, i32
  }
  func.func @transform_3(%arg0: i32, %arg1: i32) -> (i32, i32) {
    %c0_i32 = arith.constant 0 : i32
    return %arg0, %arg1 : i32, i32
  }
}

</mosaic_0001>

<llo_original>
// kernel: tpu_custom_call.1
$region0: #{tpu_custom_call.1}
  #allocation0 [shape = 'u32[]', space=smem, size = 0x4, offset = 0x4, fixed_abs, tag = 'smem constant byte address 0x4 - core index']
  #allocation1 [shape = 'u32[144,128]{1,0:T(1,128)}', space=vmem, size = 0x12000, scoped, tag = 'internal scratch']
  %s0 = inlined_call_operand.vmem [shape: f32[8,256], index: 0, kind: input, shape index: {}]
  %s1 = inlined_call_operand.vmem [shape: f32[8,1], index: 1, kind: input, shape index: {}]
  %s2 = inlined_call_operand.vmem [shape: f32[8,1], index: 2, kind: input, shape index: {}]
  %s3 = inlined_call_operand.hbm [shape: f32[8,256], index: 3, kind: output, shape index: {}]
  %s4 = sld [smem:[#allocation0]]
  $region22: #{tpu_custom_call.1} parent=0
    _
  %s6 = ssub.s32 1, %s4
  %s7 = scalar_select 0, %s6, %s4
  $region1: #{tpu_custom_call.1} parent=0
    #allocation2 [shape = 'u8[8192]{0}', space=vmem, size = 0x2000, scoped, tag = 'output window, operand 0, single buffered']
    #allocation3 [shape = 's32[1]{0}', space=sflag, size = 0x4, scoped, tag = 'scoped memory for tpu_custom_call.1']
    %8 = vsyncpa [#allocation3], 0
    // Predicated region
    $region2: #{tpu_custom_call.1} parent=1 // pred_check
      _
    $region3: #{tpu_custom_call.1} parent=1 // pred_check_branch
      %10 = sbr.rel (0) target = $region5
    $region4: #{tpu_custom_call.1} parent=1 // pred_region
      _
    $region5: #{tpu_custom_call.1} parent=1 // pred_fallthru
      _
    // Predicated region
    $region6: #{tpu_custom_call.1} parent=1 // pred_check
      _
    $region7: #{tpu_custom_call.1} parent=1 // pred_check_branch
      %12 = sbr.rel (0) target = $region9
    $region8: #{tpu_custom_call.1} parent=1 // pred_region
      _
    $region9: #{tpu_custom_call.1} parent=1 // pred_fallthru
      _
    // Predicated region
    $region10: #{tpu_custom_call.1} parent=1 // pred_check
      _
    $region11: #{tpu_custom_call.1} parent=1 // pred_check_branch
      %14 = sbr.rel (0) target = $region13
    $region12: #{tpu_custom_call.1} parent=1 // pred_region
      _
    $region13: #{tpu_custom_call.1} parent=1 // pred_fallthru
      _
    %v15 = vld [vmem:[%s1] sm:$0xff]
    %v16 = vld [vmem:[%s2] sm:$0xff]
    %v17 = vld [vmem:[%s0] sm:$0xff]
    %v18 = vld [vmem:[%s0 + $0x8] sm:$0xff]
    %20 = vset.pattern.permute.xlu0 0
    %21 = vperm.xlu0 %20, %v15
    %v22 = vpop.permute.xlu0 %21
    %v24 = vmul.f32 %v17, %v22
    %v25 = vmul.f32 %v18, %v22
    %27 = vset.pattern.permute.xlu0 0
    %28 = vperm.xlu0 %27, %v16
    %v29 = vpop.permute.xlu0 %28
    %v31 = vadd.f32 %v24, %v29
    %v32 = vadd.f32 %v25, %v29
    %33 = vst [vmem:[#allocation2] sm:$0xff] %v31
    %34 = vst [vmem:[#allocation2 + $0x8] sm:$0xff] %v32
    // Predicated region
    $region14: #{tpu_custom_call.1} parent=1 // pred_check
      _
    $region15: #{tpu_custom_call.1} parent=1 // pred_check_branch
      %36 = sbr.rel (0) target = $region17
    $region16: #{tpu_custom_call.1} parent=1 // pred_region
      %s38 = ssub.s32 256, 256
      %39 = vsyncadd [#allocation3], %s38
      %s41 = sshll.u32 [#allocation2], 4
      %s42 = int_to_ptr.vmem [resolvable:$true] %s41
      %44 = dma.vmem_to_hbm [thread:$0]  %s42, 256, %s3, [#allocation3]
    $region17: #{tpu_custom_call.1} parent=1 // pred_fallthru
      _
    // Predicated region
    $region18: #{tpu_custom_call.1} parent=1 // pred_check
      _
    $region19: #{tpu_custom_call.1} parent=1 // pred_check_branch
      %46 = sbr.rel (0) target = $region21
    $region20: #{tpu_custom_call.1} parent=1 // pred_region
      %47 = dma.done [#allocation3], 256
    $region21: #{tpu_custom_call.1} parent=1 // pred_fallthru
      _
    %48 = vsyncpa [#allocation3], 1

</llo_original>
